<compile_context>
chip_gen: v7x
topology: tpu7x:2x2x1
jax: 0.10.0
libtpu: 0.0.40
codegen_flags: <defaults>
</compile_context>

<pallas_src>
import functools

import jax
import jax.numpy as jnp
from jax.experimental import pallas as pl
from jax.experimental.pallas import tpu as pltpu

LANE = 128
DEFAULT_TILE_ROWS = 1024          # safe on v7x (64 MiB VMEM), good on v5e/v6e
VMEM_LIMIT_BYTES = 32 * 1024 * 1024


def _ceil_div(a, b):
    return -(-a // b)


def _round_up(a, b):
    return _ceil_div(a, b) * b


def _sublane_align(dtype):
    return {4: 8, 2: 16, 1: 32}[jnp.dtype(dtype).itemsize]


def _fast_recip(x):
    # EUP vrcp seed (otherwise-idle slot) + one VALU Newton step (~1e-7 rel
    # error); fewer VALU ops than the approx=False refine chain.
    r = pl.reciprocal(x, approx=True)
    return r * (2.0 - x * r)


# ---------- fused per-pixel colour math (VPU/EUP inside the kernel) ----------

def _rgb_to_hls_hsv(r, g, b):
    """Returns (h, l, s_hls, s_hsv, v); hue h is shared by HLS and HSV."""
    maxc = jnp.maximum(jnp.maximum(r, g), b)
    minc = jnp.minimum(jnp.minimum(r, g), b)
    delta = maxc - minc
    chrom = delta > 0.0

    # Hue: one reciprocal + multiplies. Inner guard keeps the reciprocal
    # finite; numerators are exactly 0 in the achromatic case, so no outer
    # select is needed.
    inv_d = _fast_recip(jnp.where(chrom, delta, 1.0))
    rc = (maxc - r) * inv_d
    gc = (maxc - g) * inv_d
    bc = (maxc - b) * inv_d
    h = jnp.where(r == maxc, bc - gc,
        jnp.where(g == maxc, 2.0 + rc - bc, 4.0 + gc - rc))
    h = h * (1.0 / 6.0)
    # Pre-scaled hue lies in [-1, 5] => h in [-1/6, 5/6]; one wrap == mod 1.
    h = jnp.where(h < 0.0, h + 1.0, h)

    # HSV (delta == 0 when maxc == 0, so the product is already 0).
    v = maxc
    s_hsv = delta * _fast_recip(jnp.where(maxc > 0.0, maxc, 1.0))

    # HLS (denom == 0 only when delta == 0, so the product is already 0).
    l = (maxc + minc) * 0.5
    denom = jnp.where(l <= 0.5, maxc + minc, 2.0 - maxc - minc)
    s_hls = delta * _fast_recip(jnp.where(denom > 0.0, denom, 1.0))

    return h, l, s_hls, s_hsv, v


# ------------------------------- Pallas kernel -------------------------------

def _make_loss_kernel(t, rows_a, needs_mask):
    def kernel(orig_ref, gen_ref, out_ref):
        # orig_ref / gen_ref: (1, 3, t, 128) RGB row tile of one image
        # out_ref: (1, 1, 8, 128) per-(batch, tile) partial sum (own block)
        def planes(ref):
            return (ref[0, 0].astype(jnp.float32),
                    ref[0, 1].astype(jnp.float32),
                    ref[0, 2].astype(jnp.float32))

        ro, go, bo = planes(orig_ref)
        rg, gg, bg = planes(gen_ref)

        if needs_mask:
            # Final tile is a partial block: rows >= `valid` are out of range
            # and hold undefined data. Zero them on BOTH inputs before the
            # colour math (identical pixels -> zero diff, and no NaN can leak).
            valid = rows_a - pl.program_id(1) * t
            keep = jax.lax.broadcasted_iota(jnp.int32, (t, LANE), 0) < valid
            ro = jnp.where(keep, ro, 0.0)
            go = jnp.where(keep, go, 0.0)
            bo = jnp.where(keep, bo, 0.0)
            rg = jnp.where(keep, rg, 0.0)
            gg = jnp.where(keep, gg, 0.0)
            bg = jnp.where(keep, bg, 0.0)

        ho, lo, so_hls, so_hsv, vo = _rgb_to_hls_hsv(ro, go, bo)
        hg, lg, sg_hls, sg_hsv, vg = _rgb_to_hls_hsv(rg, gg, bg)

        # Hue is identical in HLS and HSV: its squared diff is counted twice.
        dh = ho - hg
        sq = (2.0 * dh * dh
              + (lo - lg) ** 2 + (so_hls - sg_hls) ** 2
              + (so_hsv - sg_hsv) ** 2 + (vo - vg) ** 2)

        # (t,128) -> (t//8, 8, 128) is layout-preserving; the axis-0 sum is
        # pure VALU adds (lane-dense partial, no cross-lane reduce in-kernel).
        out_ref[0, 0] = jnp.sum(sq.reshape(-1, 8, LANE), axis=0)

    return kernel


# --------------------------------- wrapper -----------------------------------

@functools.partial(jax.jit, static_argnames=("max_tile_rows",))
def combined_color_loss(original_img, generated_img, *,
                        max_tile_rows=DEFAULT_TILE_ROWS):
    """original_img, generated_img: (N, 3, H, W) RGB in [0,1] (f32 or bf16)."""
    n, c, hh, ww = original_img.shape
    if c != 3:
        raise ValueError("expected RGB input (N, 3, H, W)")
    p_img = hh * ww

    # Keep narrow dtypes narrow in HBM; cast per block inside the kernel.
    if (original_img.dtype == generated_img.dtype
            and original_img.dtype in (jnp.float32, jnp.bfloat16)):
        in_dtype = original_img.dtype
    else:
        in_dtype = jnp.float32
        original_img = original_img.astype(jnp.float32)
        generated_img = generated_img.astype(jnp.float32)

    align = _sublane_align(in_dtype)
    if max_tile_rows % align:
        max_tile_rows = _round_up(max_tile_rows, align)

    # Lane-dense layout: (N, 3, rows_a, 128). Padding (a full HBM copy) is
    # only needed when H*W is not a multiple of align*128; the partial final
    # tile is otherwise handled by in-kernel masking instead of jnp.pad.
    rows = _ceil_div(p_img, LANE)
    rows_a = _round_up(rows, align)
    pad = rows_a * LANE - p_img

    if rows_a <= max_tile_rows:
        tiles, t = 1, rows_a
    else:
        tiles = _ceil_div(rows_a, max_tile_rows)
        t = _round_up(_ceil_div(rows_a, tiles), align)
    needs_mask = tiles * t > rows_a

    def to_planes(x):
        x = x.reshape(n, 3, p_img)                      # free contiguous view
        if pad:
            # Zero padding identical in BOTH inputs -> zero diff contribution.
            x = jnp.pad(x, ((0, 0), (0, 0), (0, pad)))
        return x.reshape(n, 3, rows_a, LANE)

    o = to_planes(original_img)
    g = to_planes(generated_img)

    partial = pl.pallas_call(
        _make_loss_kernel(t, rows_a, needs_mask),
        out_shape=jax.ShapeDtypeStruct((n, tiles, 8, LANE), jnp.float32),
        grid_spec=pltpu.PrefetchScalarGridSpec(
            num_scalar_prefetch=0,
            grid=(n, tiles),
            in_specs=[
                pl.BlockSpec((1, 3, t, LANE), lambda b, i: (b, 0, i, 0)),
                pl.BlockSpec((1, 3, t, LANE), lambda b, i: (b, 0, i, 0)),
            ],
            out_specs=pl.BlockSpec((1, 1, 8, LANE), lambda b, i: (b, i, 0, 0)),
        ),
        compiler_params=pltpu.CompilerParams(
            dimension_semantics=("parallel", "parallel"),
            vmem_limit_bytes=VMEM_LIMIT_BYTES),
    )(o, g)

    # Single cross-lane reduce, done once outside the kernel.
    total_sq = jnp.sum(partial)
    denom = jnp.float32(n * 3 * hh * ww)   # each colour space has N*3*H*W elems
    return total_sq / denom


# ------------------------- pure-JAX reference (check) ------------------------

def _ref_hue(r, g, b, maxc, delta):
    safe = jnp.where(delta > 0, delta, 1.0)
    rc = (maxc - r) / safe
    gc = (maxc - g) / safe
    bc = (maxc - b) / safe
    h = jnp.where(r == maxc, bc - gc,
        jnp.where(g == maxc, 2.0 + rc - bc, 4.0 + gc - rc))
    h = (h * (1.0 / 6.0)) % 1.0
    return jnp.where(delta > 0, h, 0.0)


def _ref_rgb_to_hsv(r, g, b):
    maxc = jnp.maximum(jnp.maximum(r, g), b)
    minc = jnp.minimum(jnp.minimum(r, g), b)
    delta = maxc - minc
    v = maxc
    s = jnp.where(maxc > 0, delta / jnp.where(maxc > 0, maxc, 1.0), 0.0)
    h = _ref_hue(r, g, b, maxc, delta)
    return h, s, v


def _ref_rgb_to_hls(r, g, b):
    maxc = jnp.maximum(jnp.maximum(r, g), b)
    minc = jnp.minimum(jnp.minimum(r, g), b)
    delta = maxc - minc
    l = (maxc + minc) * 0.5
    denom = jnp.where(l <= 0.5, maxc + minc, 2.0 - maxc - minc)
    s = jnp.where(delta > 0, delta / jnp.where(denom > 0, denom, 1.0), 0.0)
    h = _ref_hue(r, g, b, maxc, delta)
    return h, l, s


def _reference_loss(orig, gen):
    def split(x):
        x = x.astype(jnp.float32)
        return x[:, 0], x[:, 1], x[:, 2]

    ro, go, bo = split(orig)
    rg, gg, bg = split(gen)

    hls_o = jnp.stack(_ref_rgb_to_hls(ro, go, bo), axis=1)
    hls_g = jnp.stack(_ref_rgb_to_hls(rg, gg, bg), axis=1)
    hsv_o = jnp.stack(_ref_rgb_to_hsv(ro, go, bo), axis=1)
    hsv_g = jnp.stack(_ref_rgb_to_hsv(rg, gg, bg), axis=1)
    return jnp.mean((hls_o - hls_g) ** 2) + jnp.mean((hsv_o - hsv_g) ** 2)


if __name__ == "__main__":
    key = jax.random.PRNGKey(0)
    k1, k2 = jax.random.split(key)

    # Small shapes consistent with the forward pass: RGB images, NCHW.
    original = jax.random.uniform(k1, (2, 3, 16, 16), dtype=jnp.float32)
    generated = jax.random.uniform(k2, (2, 3, 16, 16), dtype=jnp.float32)
    loss = jax.block_until_ready(combined_color_loss(original, generated))
    ref = jax.block_until_ready(_reference_loss(original, generated))
    assert jnp.allclose(loss, ref, rtol=1e-4, atol=1e-6), (loss, ref)

    # Second case exercises the multi-tile path with a partial (masked) final
    # block and no wrapper padding: 40 lane-rows, forced tile of 16 rows.
    k3, k4 = jax.random.split(k2)
    original2 = jax.random.uniform(k3, (1, 3, 40, 128), dtype=jnp.float32)
    generated2 = jax.random.uniform(k4, (1, 3, 40, 128), dtype=jnp.float32)
    loss2 = jax.block_until_ready(
        combined_color_loss(original2, generated2, max_tile_rows=16))
    ref2 = jax.block_until_ready(_reference_loss(original2, generated2))
    assert jnp.allclose(loss2, ref2, rtol=1e-4, atol=1e-6), (loss2, ref2)

    print("KERNEL_OK")
</pallas_src>

<mosaic_0001>
module attributes {stable_mosaic.version = 11 : i64} {
  func.func @kernel(%arg0: i32, %arg1: i32, %arg2: memref<1x3x8x128xf32, #tpu.memory_space<vmem>>, %arg3: memref<1x3x8x128xf32, #tpu.memory_space<vmem>>, %arg4: memref<1x1x8x128xf32, #tpu.memory_space<vmem>>) attributes {dimension_semantics = [#tpu.dimension_semantics<parallel>, #tpu.dimension_semantics<parallel>], iteration_bounds = array<i64: 2, 1>, scalar_prefetch = 0 : i64, scratch_operands = 0 : i64, tpu.core_type = #tpu.core_type<tc>, window_params = [{transform_indices = @transform_0, window_bounds = array<i64: 1, 3, 8, 128>}, {transform_indices = @transform_1, window_bounds = array<i64: 1, 3, 8, 128>}, {transform_indices = @transform_2, window_bounds = array<i64: 1, 1, 8, 128>}]} {
    %c0 = arith.constant 0 : index
    %c0_0 = arith.constant 0 : index
    %c0_1 = arith.constant 0 : index
    %c0_2 = arith.constant 0 : index
    %0 = vector.load %arg2[%c0, %c0_0, %c0_1, %c0_2] : memref<1x3x8x128xf32, #tpu.memory_space<vmem>>, vector<1x1x8x128xf32>
    %1 = vector.shape_cast %0 : vector<1x1x8x128xf32> to vector<8x128xf32>
    %c0_3 = arith.constant 0 : index
    %c1 = arith.constant 1 : index
    %c0_4 = arith.constant 0 : index
    %c0_5 = arith.constant 0 : index
    %2 = vector.load %arg2[%c0_3, %c1, %c0_4, %c0_5] : memref<1x3x8x128xf32, #tpu.memory_space<vmem>>, vector<1x1x8x128xf32>
    %3 = vector.shape_cast %2 : vector<1x1x8x128xf32> to vector<8x128xf32>
    %c0_6 = arith.constant 0 : index
    %c2 = arith.constant 2 : index
    %c0_7 = arith.constant 0 : index
    %c0_8 = arith.constant 0 : index
    %4 = vector.load %arg2[%c0_6, %c2, %c0_7, %c0_8] : memref<1x3x8x128xf32, #tpu.memory_space<vmem>>, vector<1x1x8x128xf32>
    %5 = vector.shape_cast %4 : vector<1x1x8x128xf32> to vector<8x128xf32>
    %c0_9 = arith.constant 0 : index
    %c0_10 = arith.constant 0 : index
    %c0_11 = arith.constant 0 : index
    %c0_12 = arith.constant 0 : index
    %6 = vector.load %arg3[%c0_9, %c0_10, %c0_11, %c0_12] : memref<1x3x8x128xf32, #tpu.memory_space<vmem>>, vector<1x1x8x128xf32>
    %7 = vector.shape_cast %6 : vector<1x1x8x128xf32> to vector<8x128xf32>
    %c0_13 = arith.constant 0 : index
    %c1_14 = arith.constant 1 : index
    %c0_15 = arith.constant 0 : index
    %c0_16 = arith.constant 0 : index
    %8 = vector.load %arg3[%c0_13, %c1_14, %c0_15, %c0_16] : memref<1x3x8x128xf32, #tpu.memory_space<vmem>>, vector<1x1x8x128xf32>
    %9 = vector.shape_cast %8 : vector<1x1x8x128xf32> to vector<8x128xf32>
    %c0_17 = arith.constant 0 : index
    %c2_18 = arith.constant 2 : index
    %c0_19 = arith.constant 0 : index
    %c0_20 = arith.constant 0 : index
    %10 = vector.load %arg3[%c0_17, %c2_18, %c0_19, %c0_20] : memref<1x3x8x128xf32, #tpu.memory_space<vmem>>, vector<1x1x8x128xf32>
    %11 = vector.shape_cast %10 : vector<1x1x8x128xf32> to vector<8x128xf32>
    %12 = arith.maximumf %1, %3 : vector<8x128xf32>
    %13 = arith.maximumf %12, %5 : vector<8x128xf32>
    %14 = arith.minimumf %1, %3 : vector<8x128xf32>
    %15 = arith.minimumf %14, %5 : vector<8x128xf32>
    %16 = arith.subf %13, %15 : vector<8x128xf32>
    %cst = arith.constant 0.000000e+00 : f32
    %17 = vector.broadcast %cst : f32 to vector<8x128xf32>
    %18 = arith.cmpf ogt, %16, %17 : vector<8x128xf32>
    %cst_21 = arith.constant 1.000000e+00 : f32
    %19 = vector.broadcast %cst_21 : f32 to vector<8x128xf32>
    %20 = arith.select %18, %16, %19 : vector<8x128xi1>, vector<8x128xf32>
    %21 = tpu.reciprocal %20 {approx = true} : vector<8x128xf32> -> vector<8x128xf32>
    %22 = arith.mulf %20, %21 : vector<8x128xf32>
    %cst_22 = arith.constant 2.000000e+00 : f32
    %23 = vector.broadcast %cst_22 : f32 to vector<8x128xf32>
    %24 = arith.subf %23, %22 : vector<8x128xf32>
    %25 = arith.mulf %21, %24 : vector<8x128xf32>
    %26 = arith.subf %13, %1 : vector<8x128xf32>
    %27 = arith.mulf %26, %25 : vector<8x128xf32>
    %28 = arith.subf %13, %3 : vector<8x128xf32>
    %29 = arith.mulf %28, %25 : vector<8x128xf32>
    %30 = arith.subf %13, %5 : vector<8x128xf32>
    %31 = arith.mulf %30, %25 : vector<8x128xf32>
    %32 = arith.cmpf oeq, %1, %13 : vector<8x128xf32>
    %33 = arith.subf %31, %29 : vector<8x128xf32>
    %34 = arith.cmpf oeq, %3, %13 : vector<8x128xf32>
    %cst_23 = arith.constant 2.000000e+00 : f32
    %35 = vector.broadcast %cst_23 : f32 to vector<8x128xf32>
    %36 = arith.addf %35, %27 : vector<8x128xf32>
    %37 = arith.subf %36, %31 : vector<8x128xf32>
    %cst_24 = arith.constant 4.000000e+00 : f32
    %38 = vector.broadcast %cst_24 : f32 to vector<8x128xf32>
    %39 = arith.addf %38, %29 : vector<8x128xf32>
    %40 = arith.subf %39, %27 : vector<8x128xf32>
    %41 = arith.select %34, %37, %40 : vector<8x128xi1>, vector<8x128xf32>
    %42 = arith.select %32, %33, %41 : vector<8x128xi1>, vector<8x128xf32>
    %cst_25 = arith.constant 0.166666672 : f32
    %43 = vector.broadcast %cst_25 : f32 to vector<8x128xf32>
    %44 = arith.mulf %42, %43 : vector<8x128xf32>
    %cst_26 = arith.constant 0.000000e+00 : f32
    %45 = vector.broadcast %cst_26 : f32 to vector<8x128xf32>
    %46 = arith.cmpf olt, %44, %45 : vector<8x128xf32>
    %cst_27 = arith.constant 1.000000e+00 : f32
    %47 = vector.broadcast %cst_27 : f32 to vector<8x128xf32>
    %48 = arith.addf %44, %47 : vector<8x128xf32>
    %49 = arith.select %46, %48, %44 : vector<8x128xi1>, vector<8x128xf32>
    %cst_28 = arith.constant 0.000000e+00 : f32
    %50 = vector.broadcast %cst_28 : f32 to vector<8x128xf32>
    %51 = arith.cmpf ogt, %13, %50 : vector<8x128xf32>
    %cst_29 = arith.constant 1.000000e+00 : f32
    %52 = vector.broadcast %cst_29 : f32 to vector<8x128xf32>
    %53 = arith.select %51, %13, %52 : vector<8x128xi1>, vector<8x128xf32>
    %54 = tpu.reciprocal %53 {approx = true} : vector<8x128xf32> -> vector<8x128xf32>
    %55 = arith.mulf %53, %54 : vector<8x128xf32>
    %cst_30 = arith.constant 2.000000e+00 : f32
    %56 = vector.broadcast %cst_30 : f32 to vector<8x128xf32>
    %57 = arith.subf %56, %55 : vector<8x128xf32>
    %58 = arith.mulf %54, %57 : vector<8x128xf32>
    %59 = arith.mulf %16, %58 : vector<8x128xf32>
    %60 = arith.addf %13, %15 : vector<8x128xf32>
    %cst_31 = arith.constant 5.000000e-01 : f32
    %61 = vector.broadcast %cst_31 : f32 to vector<8x128xf32>
    %62 = arith.mulf %60, %61 : vector<8x128xf32>
    %cst_32 = arith.constant 5.000000e-01 : f32
    %63 = vector.broadcast %cst_32 : f32 to vector<8x128xf32>
    %64 = arith.cmpf ole, %62, %63 : vector<8x128xf32>
    %65 = arith.addf %13, %15 : vector<8x128xf32>
    %cst_33 = arith.constant 2.000000e+00 : f32
    %66 = vector.broadcast %cst_33 : f32 to vector<8x128xf32>
    %67 = arith.subf %66, %13 : vector<8x128xf32>
    %68 = arith.subf %67, %15 : vector<8x128xf32>
    %69 = arith.select %64, %65, %68 : vector<8x128xi1>, vector<8x128xf32>
    %cst_34 = arith.constant 0.000000e+00 : f32
    %70 = vector.broadcast %cst_34 : f32 to vector<8x128xf32>
    %71 = arith.cmpf ogt, %69, %70 : vector<8x128xf32>
    %cst_35 = arith.constant 1.000000e+00 : f32
    %72 = vector.broadcast %cst_35 : f32 to vector<8x128xf32>
    %73 = arith.select %71, %69, %72 : vector<8x128xi1>, vector<8x128xf32>
    %74 = tpu.reciprocal %73 {approx = true} : vector<8x128xf32> -> vector<8x128xf32>
    %75 = arith.mulf %73, %74 : vector<8x128xf32>
    %cst_36 = arith.constant 2.000000e+00 : f32
    %76 = vector.broadcast %cst_36 : f32 to vector<8x128xf32>
    %77 = arith.subf %76, %75 : vector<8x128xf32>
    %78 = arith.mulf %74, %77 : vector<8x128xf32>
    %79 = arith.mulf %16, %78 : vector<8x128xf32>
    %80 = arith.maximumf %7, %9 : vector<8x128xf32>
    %81 = arith.maximumf %80, %11 : vector<8x128xf32>
    %82 = arith.minimumf %7, %9 : vector<8x128xf32>
    %83 = arith.minimumf %82, %11 : vector<8x128xf32>
    %84 = arith.subf %81, %83 : vector<8x128xf32>
    %cst_37 = arith.constant 0.000000e+00 : f32
    %85 = vector.broadcast %cst_37 : f32 to vector<8x128xf32>
    %86 = arith.cmpf ogt, %84, %85 : vector<8x128xf32>
    %cst_38 = arith.constant 1.000000e+00 : f32
    %87 = vector.broadcast %cst_38 : f32 to vector<8x128xf32>
    %88 = arith.select %86, %84, %87 : vector<8x128xi1>, vector<8x128xf32>
    %89 = tpu.reciprocal %88 {approx = true} : vector<8x128xf32> -> vector<8x128xf32>
    %90 = arith.mulf %88, %89 : vector<8x128xf32>
    %cst_39 = arith.constant 2.000000e+00 : f32
    %91 = vector.broadcast %cst_39 : f32 to vector<8x128xf32>
    %92 = arith.subf %91, %90 : vector<8x128xf32>
    %93 = arith.mulf %89, %92 : vector<8x128xf32>
    %94 = arith.subf %81, %7 : vector<8x128xf32>
    %95 = arith.mulf %94, %93 : vector<8x128xf32>
    %96 = arith.subf %81, %9 : vector<8x128xf32>
    %97 = arith.mulf %96, %93 : vector<8x128xf32>
    %98 = arith.subf %81, %11 : vector<8x128xf32>
    %99 = arith.mulf %98, %93 : vector<8x128xf32>
    %100 = arith.cmpf oeq, %7, %81 : vector<8x128xf32>
    %101 = arith.subf %99, %97 : vector<8x128xf32>
    %102 = arith.cmpf oeq, %9, %81 : vector<8x128xf32>
    %cst_40 = arith.constant 2.000000e+00 : f32
    %103 = vector.broadcast %cst_40 : f32 to vector<8x128xf32>
    %104 = arith.addf %103, %95 : vector<8x128xf32>
    %105 = arith.subf %104, %99 : vector<8x128xf32>
    %cst_41 = arith.constant 4.000000e+00 : f32
    %106 = vector.broadcast %cst_41 : f32 to vector<8x128xf32>
    %107 = arith.addf %106, %97 : vector<8x128xf32>
    %108 = arith.subf %107, %95 : vector<8x128xf32>
    %109 = arith.select %102, %105, %108 : vector<8x128xi1>, vector<8x128xf32>
    %110 = arith.select %100, %101, %109 : vector<8x128xi1>, vector<8x128xf32>
    %cst_42 = arith.constant 0.166666672 : f32
    %111 = vector.broadcast %cst_42 : f32 to vector<8x128xf32>
    %112 = arith.mulf %110, %111 : vector<8x128xf32>
    %cst_43 = arith.constant 0.000000e+00 : f32
    %113 = vector.broadcast %cst_43 : f32 to vector<8x128xf32>
    %114 = arith.cmpf olt, %112, %113 : vector<8x128xf32>
    %cst_44 = arith.constant 1.000000e+00 : f32
    %115 = vector.broadcast %cst_44 : f32 to vector<8x128xf32>
    %116 = arith.addf %112, %115 : vector<8x128xf32>
    %117 = arith.select %114, %116, %112 : vector<8x128xi1>, vector<8x128xf32>
    %cst_45 = arith.constant 0.000000e+00 : f32
    %118 = vector.broadcast %cst_45 : f32 to vector<8x128xf32>
    %119 = arith.cmpf ogt, %81, %118 : vector<8x128xf32>
    %cst_46 = arith.constant 1.000000e+00 : f32
    %120 = vector.broadcast %cst_46 : f32 to vector<8x128xf32>
    %121 = arith.select %119, %81, %120 : vector<8x128xi1>, vector<8x128xf32>
    %122 = tpu.reciprocal %121 {approx = true} : vector<8x128xf32> -> vector<8x128xf32>
    %123 = arith.mulf %121, %122 : vector<8x128xf32>
    %cst_47 = arith.constant 2.000000e+00 : f32
    %124 = vector.broadcast %cst_47 : f32 to vector<8x128xf32>
    %125 = arith.subf %124, %123 : vector<8x128xf32>
    %126 = arith.mulf %122, %125 : vector<8x128xf32>
    %127 = arith.mulf %84, %126 : vector<8x128xf32>
    %128 = arith.addf %81, %83 : vector<8x128xf32>
    %cst_48 = arith.constant 5.000000e-01 : f32
    %129 = vector.broadcast %cst_48 : f32 to vector<8x128xf32>
    %130 = arith.mulf %128, %129 : vector<8x128xf32>
    %cst_49 = arith.constant 5.000000e-01 : f32
    %131 = vector.broadcast %cst_49 : f32 to vector<8x128xf32>
    %132 = arith.cmpf ole, %130, %131 : vector<8x128xf32>
    %133 = arith.addf %81, %83 : vector<8x128xf32>
    %cst_50 = arith.constant 2.000000e+00 : f32
    %134 = vector.broadcast %cst_50 : f32 to vector<8x128xf32>
    %135 = arith.subf %134, %81 : vector<8x128xf32>
    %136 = arith.subf %135, %83 : vector<8x128xf32>
    %137 = arith.select %132, %133, %136 : vector<8x128xi1>, vector<8x128xf32>
    %cst_51 = arith.constant 0.000000e+00 : f32
    %138 = vector.broadcast %cst_51 : f32 to vector<8x128xf32>
    %139 = arith.cmpf ogt, %137, %138 : vector<8x128xf32>
    %cst_52 = arith.constant 1.000000e+00 : f32
    %140 = vector.broadcast %cst_52 : f32 to vector<8x128xf32>
    %141 = arith.select %139, %137, %140 : vector<8x128xi1>, vector<8x128xf32>
    %142 = tpu.reciprocal %141 {approx = true} : vector<8x128xf32> -> vector<8x128xf32>
    %143 = arith.mulf %141, %142 : vector<8x128xf32>
    %cst_53 = arith.constant 2.000000e+00 : f32
    %144 = vector.broadcast %cst_53 : f32 to vector<8x128xf32>
    %145 = arith.subf %144, %143 : vector<8x128xf32>
    %146 = arith.mulf %142, %145 : vector<8x128xf32>
    %147 = arith.mulf %84, %146 : vector<8x128xf32>
    %148 = arith.subf %49, %117 : vector<8x128xf32>
    %cst_54 = arith.constant 2.000000e+00 : f32
    %149 = vector.broadcast %cst_54 : f32 to vector<8x128xf32>
    %150 = arith.mulf %149, %148 : vector<8x128xf32>
    %151 = arith.mulf %150, %148 : vector<8x128xf32>
    %152 = arith.subf %62, %130 : vector<8x128xf32>
    %153 = arith.mulf %152, %152 : vector<8x128xf32>
    %154 = arith.addf %151, %153 : vector<8x128xf32>
    %155 = arith.subf %79, %147 : vector<8x128xf32>
    %156 = arith.mulf %155, %155 : vector<8x128xf32>
    %157 = arith.addf %154, %156 : vector<8x128xf32>
    %158 = arith.subf %59, %127 : vector<8x128xf32>
    %159 = arith.mulf %158, %158 : vector<8x128xf32>
    %160 = arith.addf %157, %159 : vector<8x128xf32>
    %161 = arith.subf %13, %81 : vector<8x128xf32>
    %162 = arith.mulf %161, %161 : vector<8x128xf32>
    %163 = arith.addf %160, %162 : vector<8x128xf32>
    %164 = vector.shape_cast %163 : vector<8x128xf32> to vector<1x8x128xf32>
    %cst_55 = arith.constant dense<0.000000e+00> : vector<8x128xf32>
    %165 = vector.multi_reduction <add>, %164, %cst_55 [0] : vector<1x8x128xf32> to vector<8x128xf32>
    %c0_56 = arith.constant 0 : index
    %c0_57 = arith.constant 0 : index
    %c0_58 = arith.constant 0 : index
    %c0_59 = arith.constant 0 : index
    %166 = vector.load %arg4[%c0_56, %c0_57, %c0_58, %c0_59] : memref<1x1x8x128xf32, #tpu.memory_space<vmem>>, vector<1x1x8x128xf32>
    %167 = vector.shape_cast %166 : vector<1x1x8x128xf32> to vector<8x128xf32>
    %168 = vector.shape_cast %165 : vector<8x128xf32> to vector<1x1x8x128xf32>
    tpu.vector_store %arg4[%c0_56, %c0_57, %c0_58, %c0_59], %168 {strides = array<i32>} : memref<1x1x8x128xf32, #tpu.memory_space<vmem>>, vector<1x1x8x128xf32>,
    return
  }
  func.func @transform_0(%arg0: i32, %arg1: i32) -> (i32, i32, i32, i32) {
    %c0_i32 = arith.constant 0 : i32
    %c0_i32_0 = arith.constant 0 : i32
    %c0_i32_1 = arith.constant 0 : i32
    return %arg0, %c0_i32, %arg1, %c0_i32_0 : i32, i32, i32, i32
  }
  func.func @transform_1(%arg0: i32, %arg1: i32) -> (i32, i32, i32, i32) {
    %c0_i32 = arith.constant 0 : i32
    %c0_i32_0 = arith.constant 0 : i32
    %c0_i32_1 = arith.constant 0 : i32
    return %arg0, %c0_i32, %arg1, %c0_i32_0 : i32, i32, i32, i32
  }
  func.func @transform_2(%arg0: i32, %arg1: i32) -> (i32, i32, i32, i32) {
    %c0_i32 = arith.constant 0 : i32
    %c0_i32_0 = arith.constant 0 : i32
    %c0_i32_1 = arith.constant 0 : i32
    return %arg0, %arg1, %c0_i32, %c0_i32_0 : i32, i32, i32, i32
  }
}

</mosaic_0001>

<llo_original>
// kernel: combined_color_loss.1
$region0: #{combined_color_loss.1}
  #allocation0 [shape = 'u32[]', space=smem, size = 0x4, offset = 0x4, fixed_abs, tag = 'smem constant byte address 0x4 - core index']
  #allocation1 [shape = 'u32[144,128]{1,0:T(1,128)}', space=vmem, size = 0x12000, scoped, tag = 'internal scratch']
  %s0 = inlined_call_operand.vmem [shape: f32[2,3,8,128], index: 0, kind: input, shape index: {}]
  %s1 = inlined_call_operand.vmem [shape: f32[2,3,8,128], index: 1, kind: input, shape index: {}]
  %s2 = inlined_call_operand.vmem [shape: f32[2,1,8,128], index: 2, kind: output, shape index: {}]
  %s3 = sld [smem:[#allocation0]]
  $region41: #{combined_color_loss.1} parent=0
    _
  %s5 = ssub.s32 1, %s3
  %s6 = scalar_select 0, %s5, %s3
  loop: start=0, step=1, limit=4
  $region2: #{combined_color_loss.1} parent=0 // loop_pre_header
    _
  $region3: #{combined_color_loss.1} parent=0 // loop_header
    %s8 = sphi 0, %s12
    %p9 = scmp.ge.s32.totalorder %s8, 4
    %s15 = sphi 0, %s27
    %s16 = sphi 0, %s23
    %s17 = sphi 0, %s15
    %s18 = sphi 0, %s16
    %s19 = sphi 0, %s17
    %s20 = sphi 0, %s18
    %s32 = sphi 0, %s34
    %s35 = sphi 0, %s32
    %s36 = sphi 0, %s35
    %s52 = sphi 0, %s36
    %s60 = sphi 0, %s62
    %s63 = sphi 0, %s60
    %s64 = sphi 0, %s63
    %s80 = sphi 0, %s64
    %s88 = sphi 0, %s90
    %s91 = sphi 0, %s88
    %s92 = sphi 0, %s91
    %s108 = sphi 0, %s92
  $region4: #{combined_color_loss.1} parent=0 // loop_header_branch
    %11 = sbr.rel (%p9) target = $region8
  $region5: #{combined_color_loss.1} parent=0 // loop_body
    %s13 = ssub.s32 %s8, 1
    %s14 = ssub.s32 %s8, 2
    %s21 = sadd.s32 1, %s16
    %p22 = scmp.ge.s32.totalorder %s21, 1
    %s23 = scalar_select %p22, 0, %s21
    %s24 = sadd.s32 1, %s15
    %s25 = scalar_select %p22, %s24, %s15
    %p26 = scmp.ge.s32.totalorder %s25, 2
    %s27 = scalar_select %p26, 0, %s25
    %s28 = ssub.s32 %s15, %s27
    %s29 = ssub.s32 %s16, %s23
    %s30 = sor.u32 %s28, %s29
    %p31 = scmp.eq.s32.totalorder %s30, 0
    %s33 = sadd.s32 %s32, 1
    %s34 = scalar_select %p31, %s32, %s33
    %p37 = pneg %p31
    %p38 = scmp.eq.s32.totalorder %s8, 1
    %p39 = por %p37, %p38
    %p40 = scmp.ne.s32.totalorder %s32, %s35
    %p41 = scmp.eq.s32.totalorder %s8, 0
    %p42 = por %p40, %p41
    %p43 = scmp.ne.s32.totalorder %s32, %s35
    %p44 = scmp.eq.s32.totalorder %s13, 1
    %p45 = por %p43, %p44
    %p46 = scmp.ne.s32.totalorder %s35, %s36
    %p47 = scmp.eq.s32.totalorder %s13, 0
    %p48 = por %p46, %p47
    %p49 = scmp.ne.s32.totalorder %s35, %s36
    %p50 = scmp.eq.s32.totalorder %s14, 1
    %p51 = por %p49, %p50
    %p53 = scmp.ne.s32.totalorder %s36, %s52
    %p54 = scmp.eq.s32.totalorder %s14, 0
    %p55 = por %p53, %p54
    %s56 = ssub.s32 %s15, %s27
    %s57 = ssub.s32 %s16, %s23
    %s58 = sor.u32 %s56, %s57
    %p59 = scmp.eq.s32.totalorder %s58, 0
    %s61 = sadd.s32 %s60, 1
    %s62 = scalar_select %p59, %s60, %s61
    %p65 = pneg %p59
    %p66 = scmp.eq.s32.totalorder %s8, 1
    %p67 = por %p65, %p66
    %p68 = scmp.ne.s32.totalorder %s60, %s63
    %p69 = scmp.eq.s32.totalorder %s8, 0
    %p70 = por %p68, %p69
    %p71 = scmp.ne.s32.totalorder %s60, %s63
    %p72 = scmp.eq.s32.totalorder %s13, 1
    %p73 = por %p71, %p72
    %p74 = scmp.ne.s32.totalorder %s63, %s64
    %p75 = scmp.eq.s32.totalorder %s13, 0
    %p76 = por %p74, %p75
    %p77 = scmp.ne.s32.totalorder %s63, %s64
    %p78 = scmp.eq.s32.totalorder %s14, 1
    %p79 = por %p77, %p78
    %p81 = scmp.ne.s32.totalorder %s64, %s80
    %p82 = scmp.eq.s32.totalorder %s14, 0
    %p83 = por %p81, %p82
    %s84 = ssub.s32 %s15, %s27
    %s85 = ssub.s32 %s16, %s23
    %s86 = sor.u32 %s84, %s85
    %p87 = scmp.eq.s32.totalorder %s86, 0
    %s89 = sadd.s32 %s88, 1
    %s90 = scalar_select %p87, %s88, %s89
    %p93 = pneg %p87
    %p94 = scmp.eq.s32.totalorder %s8, 1
    %p95 = por %p93, %p94
    %p96 = scmp.ne.s32.totalorder %s88, %s91
    %p97 = scmp.eq.s32.totalorder %s8, 0
    %p98 = por %p96, %p97
    %p99 = scmp.ne.s32.totalorder %s88, %s91
    %p100 = scmp.eq.s32.totalorder %s13, 1
    %p101 = por %p99, %p100
    %p102 = scmp.ne.s32.totalorder %s91, %s92
    %p103 = scmp.eq.s32.totalorder %s13, 0
    %p104 = por %p102, %p103
    %p105 = scmp.ne.s32.totalorder %s91, %s92
    %p106 = scmp.eq.s32.totalorder %s14, 1
    %p107 = por %p105, %p106
    %p109 = scmp.ne.s32.totalorder %s92, %s108
    %p110 = scmp.eq.s32.totalorder %s14, 0
    %p111 = por %p109, %p110
    %p112 = scmp.le.s32.totalorder 1, %s8
    %p113 = scmp.lt.s32.totalorder %s8, 3
    %p114 = pnand %p112, %p113
    %p115 = pneg %p114
    // Predicated region
    $region9: #{combined_color_loss.1} parent=5 // pred_check
      _
    $region10: #{combined_color_loss.1} parent=5 // pred_check_branch
      %117 = sbr.rel (%p114) target = $region12
    $region11: #{combined_color_loss.1} parent=5 // pred_region
      %s118 = ssub.s32 %s8, 1
    $region12: #{combined_color_loss.1} parent=5 // pred_fallthru
      _
    %p119 = scmp.lt.s32.totalorder %s8, 2
    // Predicated region
    $region13: #{combined_color_loss.1} parent=5 // pred_check
      %p120 = pneg %p119
    $region14: #{combined_color_loss.1} parent=5 // pred_check_branch
      %122 = sbr.rel (%p120) target = $region16
    $region15: #{combined_color_loss.1} parent=5 // pred_region
      // Predicated region
      $region17: #{combined_color_loss.1} parent=15 // pred_check
        %p123 = pneg %p42
      $region18: #{combined_color_loss.1} parent=15 // pred_check_branch
        %125 = sbr.rel (%p123) target = $region20
      $region19: #{combined_color_loss.1} parent=15 // pred_region
        %p126 = scmp.lt.s32.totalorder %s15, 1
        %s127 = scalar_select %p126, %s15, 1
        %p128 = scmp.lt.s32.totalorder %s16, 0
        %s129 = scalar_select %p128, %s16, 0
        %s130 = smul.addr %s127, 3
        %s131 = sadd.s32 %s129, %s130
        %s132 = smul.addr %s131, 8
        %s133 = scalar_lea.vmem %s0, %s132
      $region20: #{combined_color_loss.1} parent=15 // pred_fallthru
        _
      // Predicated region
      $region21: #{combined_color_loss.1} parent=15 // pred_check
        %p134 = pneg %p70
      $region22: #{combined_color_loss.1} parent=15 // pred_check_branch
        %136 = sbr.rel (%p134) target = $region24
      $region23: #{combined_color_loss.1} parent=15 // pred_region
        %p137 = scmp.lt.s32.totalorder %s15, 1
        %s138 = scalar_select %p137, %s15, 1
        %p139 = scmp.lt.s32.totalorder %s16, 0
        %s140 = scalar_select %p139, %s16, 0
        %s141 = smul.addr %s138, 3
        %s142 = sadd.s32 %s140, %s141
        %s143 = smul.addr %s142, 8
        %s144 = scalar_lea.vmem %s1, %s143
      $region24: #{combined_color_loss.1} parent=15 // pred_fallthru
        _
    $region16: #{combined_color_loss.1} parent=5 // pred_fallthru
      _
    %p145 = scmp.le.s32.totalorder 1, %s8
    %p146 = scmp.lt.s32.totalorder %s8, 3
    %p147 = pnand %p145, %p146
    %p148 = pneg %p147
    // Predicated region
    $region25: #{combined_color_loss.1} parent=5 // pred_check
      _
    $region26: #{combined_color_loss.1} parent=5 // pred_check_branch
      %150 = sbr.rel (%p147) target = $region28
    $region27: #{combined_color_loss.1} parent=5 // pred_region
      %s151 = ssub.s32 %s8, 1
      %p152 = scmp.lt.s32.totalorder %s17, 1
      %s153 = scalar_select %p152, %s17, 1
      %p154 = scmp.lt.s32.totalorder %s18, 0
      %s155 = scalar_select %p154, %s18, 0
      %s156 = smul.addr %s153, 3
      %s157 = sadd.s32 %s155, %s156
      %s158 = smul.addr %s157, 8
      %s159 = scalar_lea.vmem %s0, %s158
      %p160 = pneg %p48
      %p161 = pneg %p45
      %p162 = scmp.lt.s32.totalorder %s17, 1
      %s163 = scalar_select %p162, %s17, 1
      %p164 = scmp.lt.s32.totalorder %s18, 0
      %s165 = scalar_select %p164, %s18, 0
      %s166 = smul.addr %s163, 3
      %s167 = sadd.s32 %s165, %s166
      %s168 = smul.addr %s167, 8
      %s169 = scalar_lea.vmem %s1, %s168
      %p170 = pneg %p76
      %p171 = pneg %p73
      %p172 = pneg %p104
      %p173 = pneg %p101
      %p174 = scmp.lt.s32.totalorder %s17, 1
      %s175 = scalar_select %p174, %s17, 1
      %p176 = scmp.lt.s32.totalorder %s18, 0
      %s177 = scalar_select %p176, %s18, 0
      %s178 = sadd.s32 %s177, %s175
      %s179 = smul.addr %s178, 8
      %s180 = scalar_lea.vmem %s2, %s179
      %p181 = scmp.lt.s32.totalorder %s17, 1
      %s182 = scalar_select %p181, %s17, 1
      %p183 = scmp.lt.s32.totalorder %s18, 0
      %s184 = scalar_select %p183, %s18, 0
      %s185 = smul.addr %s182, 3
      %s186 = sadd.s32 %s184, %s185
      %s187 = smul.addr %s186, 8
      %s188 = scalar_lea.vmem %s0, %s187
      %p189 = scmp.lt.s32.totalorder %s17, 1
      %s190 = scalar_select %p189, %s17, 1
      %p191 = scmp.lt.s32.totalorder %s18, 0
      %s192 = scalar_select %p191, %s18, 0
      %s193 = smul.addr %s190, 3
      %s194 = sadd.s32 %s192, %s193
      %s195 = smul.addr %s194, 8
      %s196 = scalar_lea.vmem %s1, %s195
      %p197 = scmp.lt.s32.totalorder %s17, 1
      %s198 = scalar_select %p197, %s17, 1
      %p199 = scmp.lt.s32.totalorder %s18, 0
      %s200 = scalar_select %p199, %s18, 0
      %s201 = sadd.s32 %s200, %s198
      %s202 = smul.addr %s201, 8
      %s203 = scalar_lea.vmem %s2, %s202
      %v204 = vld [vmem:[%s188] sm:$0xff]
      %s205 = scalar_lea.vmem %s188, 8
      %v206 = vld [vmem:[%s205] sm:$0xff]
      %s207 = scalar_lea.vmem %s188, 16
      %v208 = vld [vmem:[%s207] sm:$0xff]
      %v209 = vld [vmem:[%s196] sm:$0xff]
      %s210 = scalar_lea.vmem %s196, 8
      %v211 = vld [vmem:[%s210] sm:$0xff]
      %s212 = scalar_lea.vmem %s196, 16
      %v213 = vld [vmem:[%s212] sm:$0xff]
      %v214 = vmax.f32 %v204, %v206
      %v215 = vmax.f32 %v214, %v208
      %v216 = vmin.f32 %v204, %v206
      %v217 = vmin.f32 %v216, %v208
      %v218 = vsub.f32 %v215, %v217
      %vm219 = vcmp.gt.f32.partialorder %v218, 0.0
      %v220 = vsel %vm219, %v218, 1.0
      %v221 = vrcp.pop %v220
      %v222 = vmul.f32 %v220, %v221
      %v223 = vsub.f32 2.0, %v222
      %v224 = vmul.f32 %v221, %v223
      %v225 = vsub.f32 %v215, %v204
      %v226 = vmul.f32 %v225, %v224
      %v227 = vsub.f32 %v215, %v206
      %v228 = vmul.f32 %v227, %v224
      %v229 = vsub.f32 %v215, %v208
      %v230 = vmul.f32 %v229, %v224
      %vm231 = vcmp.eq.f32.partialorder %v204, %v215
      %v232 = vsub.f32 %v230, %v228
      %vm233 = vcmp.eq.f32.partialorder %v206, %v215
      %v234 = vadd.f32 %v226, 2.0
      %v235 = vsub.f32 %v234, %v230
      %v236 = vadd.f32 %v228, 4.0
      %v237 = vsub.f32 %v236, %v226
      %v238 = vsel %vm233, %v235, %v237
      %v239 = vsel %vm231, %v232, %v238
      %v240 = vmul.f32 %v239, 0.16666667
      %vm241 = vcmp.lt.f32.partialorder %v240, 0.0
      %v242 = vadd.f32 %v240, 1.0
      %v243 = vsel %vm241, %v242, %v240
      %vm244 = vcmp.gt.f32.partialorder %v215, 0.0
      %v245 = vsel %vm244, %v215, 1.0
      %v246 = vrcp.pop %v245
      %v247 = vmul.f32 %v245, %v246
      %v248 = vsub.f32 2.0, %v247
      %v249 = vmul.f32 %v246, %v248
      %v250 = vmul.f32 %v218, %v249
      %v251 = vadd.f32 %v215, %v217
      %v252 = vmul.f32 %v251, 0.5
      %vm253 = vcmp.le.f32.partialorder %v252, 0.5
      %v254 = vsub.f32 2.0, %v215
      %v255 = vsub.f32 %v254, %v217
      %v256 = vsel %vm253, %v251, %v255
      %vm257 = vcmp.gt.f32.partialorder %v256, 0.0
      %v258 = vsel %vm257, %v256, 1.0
      %v259 = vrcp.pop %v258
      %v260 = vmul.f32 %v258, %v259
      %v261 = vsub.f32 2.0, %v260
      %v262 = vmul.f32 %v259, %v261
      %v263 = vmul.f32 %v218, %v262
      %v264 = vmax.f32 %v209, %v211
      %v265 = vmax.f32 %v264, %v213
      %v266 = vmin.f32 %v209, %v211
      %v267 = vmin.f32 %v266, %v213
      %v268 = vsub.f32 %v265, %v267
      %vm269 = vcmp.gt.f32.partialorder %v268, 0.0
      %v270 = vsel %vm269, %v268, 1.0
      %v271 = vrcp.pop %v270
      %v272 = vmul.f32 %v270, %v271
      %v273 = vsub.f32 2.0, %v272
      %v274 = vmul.f32 %v271, %v273
      %v275 = vsub.f32 %v265, %v209
      %v276 = vmul.f32 %v275, %v274
      %v277 = vsub.f32 %v265, %v211
      %v278 = vmul.f32 %v277, %v274
      %v279 = vsub.f32 %v265, %v213
      %v280 = vmul.f32 %v279, %v274
      %vm281 = vcmp.eq.f32.partialorder %v209, %v265
      %v282 = vsub.f32 %v280, %v278
      %vm283 = vcmp.eq.f32.partialorder %v211, %v265
      %v284 = vadd.f32 %v276, 2.0
      %v285 = vsub.f32 %v284, %v280
      %v286 = vadd.f32 %v278, 4.0
      %v287 = vsub.f32 %v286, %v276
      %v288 = vsel %vm283, %v285, %v287
      %v289 = vsel %vm281, %v282, %v288
      %v290 = vmul.f32 %v289, 0.16666667
      %vm291 = vcmp.lt.f32.partialorder %v290, 0.0
      %v292 = vadd.f32 %v290, 1.0
      %v293 = vsel %vm291, %v292, %v290
      %vm294 = vcmp.gt.f32.partialorder %v265, 0.0
      %v295 = vsel %vm294, %v265, 1.0
      %v296 = vrcp.pop %v295
      %v297 = vmul.f32 %v295, %v296
      %v298 = vsub.f32 2.0, %v297
      %v299 = vmul.f32 %v296, %v298
      %v300 = vmul.f32 %v268, %v299
      %v301 = vadd.f32 %v265, %v267
      %v302 = vmul.f32 %v301, 0.5
      %vm303 = vcmp.le.f32.partialorder %v302, 0.5
      %v304 = vsub.f32 2.0, %v265
      %v305 = vsub.f32 %v304, %v267
      %v306 = vsel %vm303, %v301, %v305
      %vm307 = vcmp.gt.f32.partialorder %v306, 0.0
      %v308 = vsel %vm307, %v306, 1.0
      %v309 = vrcp.pop %v308
      %v310 = vmul.f32 %v308, %v309
      %v311 = vsub.f32 2.0, %v310
      %v312 = vmul.f32 %v309, %v311
      %v313 = vmul.f32 %v268, %v312
      %v314 = vsub.f32 %v243, %v293
      %v315 = vmul.f32 %v314, 2.0
      %v316 = vmul.f32 %v315, %v314
      %v317 = vsub.f32 %v252, %v302
      %v318 = vmul.f32 %v317, %v317
      %v319 = vadd.f32 %v316, %v318
      %v320 = vsub.f32 %v263, %v313
      %v321 = vmul.f32 %v320, %v320
      %v322 = vadd.f32 %v319, %v321
      %v323 = vsub.f32 %v250, %v300
      %v324 = vmul.f32 %v323, %v323
      %v325 = vadd.f32 %v322, %v324
      %v326 = vsub.f32 %v215, %v265
      %v327 = vmul.f32 %v326, %v326
      %v328 = vadd.f32 %v325, %v327
      %v329 = vadd.f32 %v328, 0.0
      %330 = vst [vmem:[%s203] sm:$0xff] %v329
      %p331 = scmp.lt.s32.totalorder %s17, 1
      %s332 = scalar_select %p331, %s17, 1
      %p333 = scmp.lt.s32.totalorder %s18, 0
      %s334 = scalar_select %p333, %s18, 0
      %s335 = sadd.s32 %s334, %s332
      %s336 = smul.addr %s335, 8
      %s337 = scalar_lea.vmem %s2, %s336
      // Predicated region
      $region29: #{combined_color_loss.1} parent=27 // pred_check
        %p338 = pneg %p101
      $region30: #{combined_color_loss.1} parent=27 // pred_check_branch
        %340 = sbr.rel (%p338) target = $region32
      $region31: #{combined_color_loss.1} parent=27 // pred_region
        _
      $region32: #{combined_color_loss.1} parent=27 // pred_fallthru
        _
    $region28: #{combined_color_loss.1} parent=5 // pred_fallthru
      _
    %p341 = scmp.le.s32.totalorder 2, %s8
    // Predicated region
    $region33: #{combined_color_loss.1} parent=5 // pred_check
      %p342 = pneg %p341
    $region34: #{combined_color_loss.1} parent=5 // pred_check_branch
      %344 = sbr.rel (%p342) target = $region36
    $region35: #{combined_color_loss.1} parent=5 // pred_region
      %s345 = ssub.s32 %s8, 2
      // Predicated region
      $region37: #{combined_color_loss.1} parent=35 // pred_check
        %p346 = pneg %p107
      $region38: #{combined_color_loss.1} parent=35 // pred_check_branch
        %348 = sbr.rel (%p346) target = $region40
      $region39: #{combined_color_loss.1} parent=35 // pred_region
        %p349 = scmp.lt.s32.totalorder %s19, 1
        %s350 = scalar_select %p349, %s19, 1
        %p351 = scmp.lt.s32.totalorder %s20, 0
        %s352 = scalar_select %p351, %s20, 0
        %s353 = sadd.s32 %s352, %s350
        %s354 = smul.addr %s353, 8
        %s355 = scalar_lea.vmem %s2, %s354
      $region40: #{combined_color_loss.1} parent=35 // pred_fallthru
        _
    $region36: #{combined_color_loss.1} parent=5 // pred_fallthru
      _
  $region6: #{combined_color_loss.1} parent=0 // loop_footer
    %s12 = sadd.s32 1, %s8
  $region7: #{combined_color_loss.1} parent=0 // loop_footer_branch
    %7 = sbr.rel target = $region3
  $region8: #{combined_color_loss.1} parent=0 // loop_exit
    _

</llo_original>
